<compile_context>
chip_gen: v5e
topology: v5e:2x2
jax: 0.10.0
libtpu: 0.0.40
codegen_flags: <defaults>
</compile_context>

<pallas_src>
import jax
import jax.numpy as jnp
from jax.experimental import pallas as pl
from jax.experimental.pallas import tpu as pltpu


def _round_up(n, m):
    return ((n + m - 1) // m) * m


def _cdiv(a, b):
    return (a + b - 1) // b


def _pad2d(a, rows, cols):
    pr, pc = rows - a.shape[0], cols - a.shape[1]
    if pr or pc:
        a = jnp.pad(a, ((0, pr), (0, pc)))
    return a


def _pick_tile_b(B, target):
    target = max(16, (target // 16) * 16)      # bf16 packs 16 rows / vreg
    if B >= 16:
        return min(target, (B // 16) * 16)
    if B >= 8:
        return 8
    return B                                   # tiny batch: full-extent block


def _pick_tile_h(H_pad, target):
    target = max(128, (target // 128) * 128)
    best, t = 128, 128
    while t <= min(H_pad, target):
        if H_pad % t == 0:                     # must divide H_pad (no OOB reads on the
            best = t                           # accumulated hidden axis)
        t += 128
    return best


# --------------------------------------------------------------------------------------
# parameter preparation (do this ONCE per set of weights and cache the result)
# --------------------------------------------------------------------------------------
def prepare_params(w1, b1, w2, b2, mask=None, *, compute_dtype=jnp.bfloat16):
    """w1: (in_dim, hidden), w2: (hidden, out_dim) — pre-transposed vs. PyTorch.
    mask (optional): per-output-feature mask, any shape flattening to (out_dim,);
    it is folded into w2/b2 so the kernel needs no mask operand."""
    in_dim, hidden = w1.shape
    out_dim = w2.shape[1]
    H_pad = _round_up(hidden, 128)

    w2 = jnp.asarray(w2, jnp.float32)
    b2 = jnp.asarray(b2, jnp.float32).reshape(1, out_dim)
    if mask is not None:
        m = jnp.asarray(mask, jnp.float32).reshape(-1)
        assert m.shape[0] == out_dim, (
            "mask must be a per-output-feature mask broadcastable over batch "
            f"(expected {out_dim} elements, got {m.shape[0]})")
        w2 = w2 * m[None, :]
        b2 = b2 * m[None, :]

    w1_p = _pad2d(jnp.asarray(w1, jnp.float32), in_dim, H_pad).astype(compute_dtype)
    b1_p = _pad2d(jnp.asarray(b1, jnp.float32).reshape(1, hidden), 1, H_pad)
    w2_p = _pad2d(w2, H_pad, out_dim).astype(compute_dtype)
    return w1_p, b1_p, w2_p, b2


# --------------------------------------------------------------------------------------
# kernels
# --------------------------------------------------------------------------------------
def _mlp_kernel(x_ref, w1_ref, b1_ref, w2_ref, b2_ref, o_ref):
    # Linear1 on the MXU (bf16 operands, f32 accumulation); bias + ReLU in f32.
    x = x_ref[...].astype(w1_ref.dtype)
    h = jnp.dot(x, w1_ref[...], preferred_element_type=jnp.float32)
    h = jnp.maximum(h + b1_ref[...], 0.0)
    # Dropout: eval-mode identity.
    o = jnp.dot(h.astype(w2_ref.dtype), w2_ref[...], preferred_element_type=jnp.float32)
    o_ref[...] = (o + b2_ref[...]).astype(o_ref.dtype)


def _mlp_kernel_htiled(x_ref, w1_ref, b1_ref, w2_ref, b2_ref, o_ref, acc_ref):
    # Hidden dim streamed in chunks (grid axis 1, "arbitrary"); f32 accumulator scratch.
    j = pl.program_id(1)

    @pl.when(j == 0)
    def _():
        acc_ref[...] = jnp.zeros_like(acc_ref)

    x = x_ref[...].astype(w1_ref.dtype)
    h = jnp.dot(x, w1_ref[...], preferred_element_type=jnp.float32)
    h = jnp.maximum(h + b1_ref[...], 0.0)
    acc_ref[...] += jnp.dot(h.astype(w2_ref.dtype), w2_ref[...],
                            preferred_element_type=jnp.float32)

    @pl.when(j == pl.num_programs(1) - 1)
    def _():
        o_ref[...] = (acc_ref[...] + b2_ref[...]).astype(o_ref.dtype)


# --------------------------------------------------------------------------------------
# forward
# --------------------------------------------------------------------------------------
def basic_module_forward(x, params, a_classes, b_classes, *,
                         tile_b=512, tile_h=None, out_dtype=jnp.float32):
    """x: (B, in_dim); params: output of prepare_params(). Returns (B, a_classes, b_classes)."""
    w1_p, b1_p, w2_p, b2_p = params
    B, K = x.shape
    H_pad = w1_p.shape[1]
    N = w2_p.shape[1]
    assert N == a_classes * b_classes
    assert w1_p.shape[0] == K

    cbytes = jnp.dtype(w1_p.dtype).itemsize
    xbytes = jnp.dtype(x.dtype).itemsize
    obytes = jnp.dtype(out_dtype).itemsize
    MiB = 1024 * 1024

    try:
        vmem_cap = int(pltpu.get_tpu_info().vmem_capacity_bytes)
    except Exception:
        vmem_cap = 64 * MiB                       # conservative (v7x per-TC VMEM)
    vmem_usable = vmem_cap - 12 * MiB             # compiler headroom

    # --- batch tile: sublane(16)-aligned; >=2 "parallel" programs when B allows (v7x 2 TCs) ---
    TILE_B = _pick_tile_b(B, tile_b)
    if B >= 32 and _cdiv(B, TILE_B) < 2:
        TILE_B = max(16, _round_up(_cdiv(B, 2), 16))
    TILE_B0 = TILE_B

    resident_params = (K * H_pad + H_pad * N) * cbytes + (H_pad + N) * 4

    def act_bytes(tb, h_cols):
        # 2x-buffered x & out tiles + f32 h / acc intermediates
        return (2 * tb * K * xbytes + 2 * tb * N * obytes
                + tb * h_cols * 4 + tb * N * 4)

    use_h_tiling = tile_h is not None
    if not use_h_tiling:
        while TILE_B > 16 and resident_params + act_bytes(TILE_B, H_pad) > vmem_usable:
            TILE_B = max(16, _round_up(TILE_B // 2, 16))
        if resident_params + act_bytes(TILE_B, H_pad) > vmem_usable:
            use_h_tiling, TILE_B = True, TILE_B0   # weights too big to stay resident

    if use_h_tiling:
        TILE_H = _pick_tile_h(H_pad, tile_h if tile_h is not None else 512)
        streamed_params = 2 * (K * TILE_H + TILE_H * N) * cbytes + 2 * TILE_H * 4 + N * 4
        while TILE_B > 16 and streamed_params + act_bytes(TILE_B, TILE_H) > vmem_usable:
            TILE_B = max(16, _round_up(TILE_B // 2, 16))

    grid_b = _cdiv(B, TILE_B)
    flops = 2 * B * (K * H_pad + H_pad * N)

    def _launch(param_pm):
        kw = {} if param_pm is None else {"pipeline_mode": param_pm}
        if not use_h_tiling:
            grid = (grid_b,)
            in_specs = [
                pl.BlockSpec((TILE_B, K), lambda i: (i, 0)),         # x  (streamed, 2-buffered)
                pl.BlockSpec((K, H_pad), lambda i: (0, 0), **kw),    # w1 (VMEM-resident)
                pl.BlockSpec((1, H_pad), lambda i: (0, 0), **kw),    # b1
                pl.BlockSpec((H_pad, N), lambda i: (0, 0), **kw),    # w2 (mask already folded in)
                pl.BlockSpec((1, N), lambda i: (0, 0), **kw),        # b2
            ]
            out_specs = pl.BlockSpec((TILE_B, N), lambda i: (i, 0))
            kernel, scratch, dims = _mlp_kernel, (), ("parallel",)
            bytes_accessed = (B * K * xbytes + (K * H_pad + H_pad * N) * cbytes
                              + (H_pad + N) * 4 + B * N * obytes)
            needed = resident_params + act_bytes(TILE_B, H_pad)
        else:
            grid = (grid_b, H_pad // TILE_H)
            in_specs = [
                pl.BlockSpec((TILE_B, K), lambda i, j: (i, 0)),      # x resident across j
                pl.BlockSpec((K, TILE_H), lambda i, j: (0, j)),      # w1 streamed by H-chunk
                pl.BlockSpec((1, TILE_H), lambda i, j: (0, j)),      # b1 streamed by H-chunk
                pl.BlockSpec((TILE_H, N), lambda i, j: (j, 0)),      # w2 streamed by H-chunk
                pl.BlockSpec((1, N), lambda i, j: (0, 0), **kw),     # b2 resident
            ]
            out_specs = pl.BlockSpec((TILE_B, N), lambda i, j: (i, 0))
            kernel = _mlp_kernel_htiled
            scratch = (pltpu.VMEM((TILE_B, N), jnp.float32),)
            dims = ("parallel", "arbitrary")
            bytes_accessed = (B * K * xbytes
                              + grid_b * (K * H_pad + H_pad * N) * cbytes
                              + grid_b * (H_pad + N) * 4 + B * N * obytes)
            needed = streamed_params + act_bytes(TILE_B, TILE_H)

        vmem_limit = int(min(max(needed + 4 * MiB, 16 * MiB), vmem_cap - 4 * MiB))

        return pl.pallas_call(
            kernel,
            out_shape=jax.ShapeDtypeStruct((B, N), out_dtype),
            grid=grid,
            in_specs=in_specs,
            out_specs=out_specs,
            scratch_shapes=scratch,
            compiler_params=pltpu.CompilerParams(
                dimension_semantics=dims, vmem_limit_bytes=vmem_limit),
            cost_estimate=pl.CostEstimate(flops=flops, transcendentals=0,
                                          bytes_accessed=bytes_accessed),
        )(x, w1_p, b1_p, w2_p, b2_p)

    try:
        out = _launch(pl.Buffered(1))   # single-buffer the VMEM-resident parameters
    except Exception:
        # Fallback if this JAX build rejects Buffered(1) on the implicit pipeline.
        out = _launch(None)

    # Module's final .view(-1, a_classes, b_classes); no padding to strip.
    return out.reshape(-1, a_classes, b_classes)


if __name__ == "__main__":
    # Small, TPU-friendly shapes consistent with the module's forward.
    B = 8
    in_dim = 32
    hidden_dim = 256
    a_classes, b_classes = 4, 8
    out_dim = a_classes * b_classes  # 32

    key = jax.random.PRNGKey(0)
    kx, kw1, kb1, kw2, kb2, km = jax.random.split(key, 6)

    x = jax.random.normal(kx, (B, in_dim), dtype=jnp.float32)

    # Synthetic parameters (Linear weights stored transposed: (in, out)).
    s1 = 1.0 / jnp.sqrt(in_dim)
    w1 = jax.random.uniform(kw1, (in_dim, hidden_dim), jnp.float32, -s1, s1)
    b1 = jax.random.uniform(kb1, (1, hidden_dim), jnp.float32, -s1, s1)
    s2 = 1.0 / jnp.sqrt(hidden_dim)
    w2 = jax.random.uniform(kw2, (hidden_dim, out_dim), jnp.float32, -s2, s2)
    b2 = jax.random.uniform(kb2, (1, out_dim), jnp.float32, -s2, s2)
    mask = (jax.random.uniform(km, (1, out_dim)) > 0.5).astype(jnp.float32)

    # Prepare (pad / cast / fold-mask) parameters ONCE; reuse across forward calls.
    params_nomask = prepare_params(w1, b1, w2, b2, None)
    params_masked = prepare_params(w1, b1, w2, b2, mask)

    out_nomask = basic_module_forward(x, params_nomask, a_classes, b_classes)
    out_masked = basic_module_forward(x, params_masked, a_classes, b_classes)
    # Exercise the H-tiled (streamed-weights) fallback path as well.
    out_htiled = basic_module_forward(x, params_masked, a_classes, b_classes, tile_h=128)
    out_nomask, out_masked, out_htiled = jax.block_until_ready(
        (out_nomask, out_masked, out_htiled))

    # Reference in plain JAX with the same bf16-matmul / f32-epilogue recipe.
    xb, w1b, w2b = (a.astype(jnp.bfloat16) for a in (x, w1, w2))
    h = jnp.maximum(jnp.dot(xb, w1b, preferred_element_type=jnp.float32) + b1, 0.0)
    ref = jnp.dot(h.astype(jnp.bfloat16), w2b, preferred_element_type=jnp.float32) + b2
    ref_nomask = ref.reshape(-1, a_classes, b_classes)
    ref_masked = (ref * mask).reshape(-1, a_classes, b_classes)

    assert out_nomask.shape == (B, a_classes, b_classes)
    assert out_masked.shape == (B, a_classes, b_classes)
    assert out_htiled.shape == (B, a_classes, b_classes)
    assert jnp.allclose(out_nomask, ref_nomask, atol=2e-2, rtol=2e-2)
    assert jnp.allclose(out_masked, ref_masked, atol=2e-2, rtol=2e-2)
    assert jnp.allclose(out_htiled, ref_masked, atol=2e-2, rtol=2e-2)

    print("KERNEL_OK")
</pallas_src>

<mosaic_0001>
module attributes {stable_mosaic.version = 11 : i64} {
  func.func @_mlp_kernel(%arg0: i32, %arg1: memref<8x32xf32, #tpu.memory_space<vmem>>, %arg2: memref<32x256xbf16, #tpu.memory_space<vmem>>, %arg3: memref<1x256xf32, #tpu.memory_space<vmem>>, %arg4: memref<256x32xbf16, #tpu.memory_space<vmem>>, %arg5: memref<1x32xf32, #tpu.memory_space<vmem>>, %arg6: memref<8x32xf32, #tpu.memory_space<vmem>>) attributes {dimension_semantics = [#tpu.dimension_semantics<parallel>], iteration_bounds = array<i64: 1>, scalar_prefetch = 0 : i64, scratch_operands = 0 : i64, tpu.core_type = #tpu.core_type<tc>, window_params = [{transform_indices = @transform_0, window_bounds = array<i64: 8, 32>}, {pipeline_mode = #tpu.pipeline_mode<synchronous>, transform_indices = @transform_1, window_bounds = array<i64: 32, 256>}, {pipeline_mode = #tpu.pipeline_mode<synchronous>, transform_indices = @transform_2, window_bounds = array<i64: 1, 256>}, {pipeline_mode = #tpu.pipeline_mode<synchronous>, transform_indices = @transform_3, window_bounds = array<i64: 256, 32>}, {pipeline_mode = #tpu.pipeline_mode<synchronous>, transform_indices = @transform_4, window_bounds = array<i64: 1, 32>}, {transform_indices = @transform_5, window_bounds = array<i64: 8, 32>}]} {
    %c0 = arith.constant 0 : index
    %c0_0 = arith.constant 0 : index
    %0 = vector.load %arg1[%c0, %c0_0] : memref<8x32xf32, #tpu.memory_space<vmem>>, vector<8x32xf32>
    %1 = arith.truncf %0 : vector<8x32xf32> to vector<8x32xbf16>
    %c0_1 = arith.constant 0 : index
    %c0_2 = arith.constant 0 : index
    %2 = vector.load %arg2[%c0_1, %c0_2] : memref<32x256xbf16, #tpu.memory_space<vmem>>, vector<32x256xbf16>
    %cst = arith.constant dense<0.000000e+00> : vector<8x256xf32>
    %3 = tpu.matmul %1, %2, %cst {dimension_numbers = #tpu.dot_dimension_numbers<[1], [0], [0], [1], [0, 0, 1, 1], [], []>} : vector<8x32xbf16>, vector<32x256xbf16>, vector<8x256xf32> -> vector<8x256xf32>
    %c0_3 = arith.constant 0 : index
    %c0_4 = arith.constant 0 : index
    %4 = vector.load %arg3[%c0_3, %c0_4] : memref<1x256xf32, #tpu.memory_space<vmem>>, vector<1x256xf32>
    %5 = vector.broadcast %4 : vector<1x256xf32> to vector<8x256xf32>
    %6 = arith.addf %3, %5 : vector<8x256xf32>
    %cst_5 = arith.constant 0.000000e+00 : f32
    %7 = vector.broadcast %cst_5 : f32 to vector<8x256xf32>
    %8 = arith.maximumf %6, %7 : vector<8x256xf32>
    %9 = arith.truncf %8 : vector<8x256xf32> to vector<8x256xbf16>
    %c0_6 = arith.constant 0 : index
    %c0_7 = arith.constant 0 : index
    %10 = vector.load %arg4[%c0_6, %c0_7] : memref<256x32xbf16, #tpu.memory_space<vmem>>, vector<256x32xbf16>
    %cst_8 = arith.constant dense<0.000000e+00> : vector<8x32xf32>
    %11 = tpu.matmul %9, %10, %cst_8 {dimension_numbers = #tpu.dot_dimension_numbers<[1], [0], [0], [1], [0, 0, 1, 1], [], []>} : vector<8x256xbf16>, vector<256x32xbf16>, vector<8x32xf32> -> vector<8x32xf32>
    %c0_9 = arith.constant 0 : index
    %c0_10 = arith.constant 0 : index
    %12 = vector.load %arg5[%c0_9, %c0_10] : memref<1x32xf32, #tpu.memory_space<vmem>>, vector<1x32xf32>
    %13 = vector.broadcast %12 : vector<1x32xf32> to vector<8x32xf32>
    %14 = arith.addf %11, %13 : vector<8x32xf32>
    %c0_11 = arith.constant 0 : index
    %c0_12 = arith.constant 0 : index
    %15 = vector.load %arg6[%c0_11, %c0_12] : memref<8x32xf32, #tpu.memory_space<vmem>>, vector<8x32xf32>
    tpu.vector_store %arg6[%c0_11, %c0_12], %14 {strides = array<i32>} : memref<8x32xf32, #tpu.memory_space<vmem>>, vector<8x32xf32>,
    return
  }
  func.func @transform_0(%arg0: i32) -> (i32, i32) {
    %c0_i32 = arith.constant 0 : i32
    %c0_i32_0 = arith.constant 0 : i32
    return %arg0, %c0_i32 : i32, i32
  }
  func.func @transform_1(%arg0: i32) -> (i32, i32) {
    %c0_i32 = arith.constant 0 : i32
    %c0_i32_0 = arith.constant 0 : i32
    %c0_i32_1 = arith.constant 0 : i32
    return %c0_i32, %c0_i32_0 : i32, i32
  }
  func.func @transform_2(%arg0: i32) -> (i32, i32) {
    %c0_i32 = arith.constant 0 : i32
    %c0_i32_0 = arith.constant 0 : i32
    %c0_i32_1 = arith.constant 0 : i32
    return %c0_i32, %c0_i32_0 : i32, i32
  }
  func.func @transform_3(%arg0: i32) -> (i32, i32) {
    %c0_i32 = arith.constant 0 : i32
    %c0_i32_0 = arith.constant 0 : i32
    %c0_i32_1 = arith.constant 0 : i32
    return %c0_i32, %c0_i32_0 : i32, i32
  }
  func.func @transform_4(%arg0: i32) -> (i32, i32) {
    %c0_i32 = arith.constant 0 : i32
    %c0_i32_0 = arith.constant 0 : i32
    %c0_i32_1 = arith.constant 0 : i32
    return %c0_i32, %c0_i32_0 : i32, i32
  }
  func.func @transform_5(%arg0: i32) -> (i32, i32) {
    %c0_i32 = arith.constant 0 : i32
    %c0_i32_0 = arith.constant 0 : i32
    return %arg0, %c0_i32 : i32, i32
  }
}

module attributes {stable_mosaic.version = 11 : i64} {
  func.func @_mlp_kernel(%arg0: i32, %arg1: memref<8x32xf32, #tpu.memory_space<vmem>>, %arg2: memref<32x256xbf16, #tpu.memory_space<vmem>>, %arg3: memref<1x256xf32, #tpu.memory_space<vmem>>, %arg4: memref<256x32xbf16, #tpu.memory_space<vmem>>, %arg5: memref<1x32xf32, #tpu.memory_space<vmem>>, %arg6: memref<8x32xf32, #tpu.memory_space<vmem>>) attributes {dimension_semantics = [#tpu.dimension_semantics<parallel>], iteration_bounds = array<i64: 1>, scalar_prefetch = 0 : i64, scratch_operands = 0 : i64, tpu.core_type = #tpu.core_type<tc>, window_params = [{transform_indices = @transform_0, window_bounds = array<i64: 8, 32>}, {pipeline_mode = #tpu.pipeline_mode<synchronous>, transform_indices = @transform_1, window_bounds = array<i64: 32, 256>}, {pipeline_mode = #tpu.pipeline_mode<synchronous>, transform_indices = @transform_2, window_bounds = array<i64: 1, 256>}, {pipeline_mode = #tpu.pipeline_mode<synchronous>, transform_indices = @transform_3, window_bounds = array<i64: 256, 32>}, {pipeline_mode = #tpu.pipeline_mode<synchronous>, transform_indices = @transform_4, window_bounds = array<i64: 1, 32>}, {transform_indices = @transform_5, window_bounds = array<i64: 8, 32>}]} {
    %c0 = arith.constant 0 : index
    %c0_0 = arith.constant 0 : index
    %0 = vector.load %arg1[%c0, %c0_0] : memref<8x32xf32, #tpu.memory_space<vmem>>, vector<8x32xf32>
    %1 = arith.truncf %0 : vector<8x32xf32> to vector<8x32xbf16>
    %c0_1 = arith.constant 0 : index
    %c0_2 = arith.constant 0 : index
    %2 = vector.load %arg2[%c0_1, %c0_2] : memref<32x256xbf16, #tpu.memory_space<vmem>>, vector<32x256xbf16>
    %cst = arith.constant dense<0.000000e+00> : vector<8x256xf32>
    %3 = tpu.matmul %1, %2, %cst {dimension_numbers = #tpu.dot_dimension_numbers<[1], [0], [0], [1], [0, 0, 1, 1], [], []>} : vector<8x32xbf16>, vector<32x256xbf16>, vector<8x256xf32> -> vector<8x256xf32>
    %c0_3 = arith.constant 0 : index
    %c0_4 = arith.constant 0 : index
    %4 = vector.load %arg3[%c0_3, %c0_4] : memref<1x256xf32, #tpu.memory_space<vmem>>, vector<1x256xf32>
    %5 = vector.broadcast %4 : vector<1x256xf32> to vector<8x256xf32>
    %6 = arith.addf %3, %5 : vector<8x256xf32>
    %cst_5 = arith.constant 0.000000e+00 : f32
    %7 = vector.broadcast %cst_5 : f32 to vector<8x256xf32>
    %8 = arith.maximumf %6, %7 : vector<8x256xf32>
    %9 = arith.truncf %8 : vector<8x256xf32> to vector<8x256xbf16>
    %c0_6 = arith.constant 0 : index
    %c0_7 = arith.constant 0 : index
    %10 = vector.load %arg4[%c0_6, %c0_7] : memref<256x32xbf16, #tpu.memory_space<vmem>>, vector<256x32xbf16>
    %cst_8 = arith.constant dense<0.000000e+00> : vector<8x32xf32>
    %11 = tpu.matmul %9, %10, %cst_8 {dimension_numbers = #tpu.dot_dimension_numbers<[1], [0], [0], [1], [0, 0, 1, 1], [], []>} : vector<8x256xbf16>, vector<256x32xbf16>, vector<8x32xf32> -> vector<8x32xf32>
    %c0_9 = arith.constant 0 : index
    %c0_10 = arith.constant 0 : index
    %12 = vector.load %arg5[%c0_9, %c0_10] : memref<1x32xf32, #tpu.memory_space<vmem>>, vector<1x32xf32>
    %13 = vector.broadcast %12 : vector<1x32xf32> to vector<8x32xf32>
    %14 = arith.addf %11, %13 : vector<8x32xf32>
    %c0_11 = arith.constant 0 : index
    %c0_12 = arith.constant 0 : index
    %15 = vector.load %arg6[%c0_11, %c0_12] : memref<8x32xf32, #tpu.memory_space<vmem>>, vector<8x32xf32>
    tpu.vector_store %arg6[%c0_11, %c0_12], %14 {strides = array<i32>} : memref<8x32xf32, #tpu.memory_space<vmem>>, vector<8x32xf32>,
    return
  }
  func.func @transform_0(%arg0: i32) -> (i32, i32) {
    %c0_i32 = arith.constant 0 : i32
    %c0_i32_0 = arith.constant 0 : i32
    return %arg0, %c0_i32 : i32, i32
  }
  func.func @transform_1(%arg0: i32) -> (i32, i32) {
    %c0_i32 = arith.constant 0 : i32
    %c0_i32_0 = arith.constant 0 : i32
    %c0_i32_1 = arith.constant 0 : i32
    return %c0_i32, %c0_i32_0 : i32, i32
  }
  func.func @transform_2(%arg0: i32) -> (i32, i32) {
    %c0_i32 = arith.constant 0 : i32
    %c0_i32_0 = arith.constant 0 : i32
    %c0_i32_1 = arith.constant 0 : i32
    return %c0_i32, %c0_i32_0 : i32, i32
  }
  func.func @transform_3(%arg0: i32) -> (i32, i32) {
    %c0_i32 = arith.constant 0 : i32
    %c0_i32_0 = arith.constant 0 : i32
    %c0_i32_1 = arith.constant 0 : i32
    return %c0_i32, %c0_i32_0 : i32, i32
  }
  func.func @transform_4(%arg0: i32) -> (i32, i32) {
    %c0_i32 = arith.constant 0 : i32
    %c0_i32_0 = arith.constant 0 : i32
    %c0_i32_1 = arith.constant 0 : i32
    return %c0_i32, %c0_i32_0 : i32, i32
  }
  func.func @transform_5(%arg0: i32) -> (i32, i32) {
    %c0_i32 = arith.constant 0 : i32
    %c0_i32_0 = arith.constant 0 : i32
    return %arg0, %c0_i32 : i32, i32
  }
}

</mosaic_0001>

<llo_original>
// kernel: tpu_custom_call.1
$region0: #{tpu_custom_call.1}
  #allocation0 [shape = 'u32[]', space=smem, size = 0x4, offset = 0x4, fixed_abs, tag = 'smem constant byte address 0x4 - core index']
  #allocation1 [shape = 'u32[72,128]{1,0:T(1,128)}', space=vmem, size = 0x9000, scoped, tag = 'internal scratch']
  %s0 = inlined_call_operand.vmem [shape: f32[8,32], index: 0, kind: input, shape index: {}]
  %s1 = inlined_call_operand.vmem [shape: bf16[32,256], index: 1, kind: input, shape index: {}]
  %s2 = inlined_call_operand.vmem [shape: f32[1,256], index: 2, kind: input, shape index: {}]
  %s3 = inlined_call_operand.vmem [shape: bf16[256,32], index: 3, kind: input, shape index: {}]
  %s4 = inlined_call_operand.vmem [shape: f32[1,32], index: 4, kind: input, shape index: {}]
  %s5 = inlined_call_operand.hbm [shape: f32[8,32], index: 5, kind: output, shape index: {}]
  %s6 = sld [smem:[#allocation0]]
  $region30: #{tpu_custom_call.1} parent=0
    _
  %s8 = ssub.s32 1, %s6
  %s9 = scalar_select 0, %s8, %s6
  $region1: #{tpu_custom_call.1} parent=0
    #allocation2 [shape = 'u8[4096]{0}', space=vmem, size = 0x1000, scoped, tag = 'output window, operand 0, single buffered']
    #allocation3 [shape = 's32[1]{0}', space=sflag, size = 0x4, scoped, tag = 'scoped memory for tpu_custom_call.1']
    %10 = vsyncpa [#allocation3], 0
    // Predicated region
    $region2: #{tpu_custom_call.1} parent=1 // pred_check
      _
    $region3: #{tpu_custom_call.1} parent=1 // pred_check_branch
      %12 = sbr.rel (0) target = $region5
    $region4: #{tpu_custom_call.1} parent=1 // pred_region
      _
    $region5: #{tpu_custom_call.1} parent=1 // pred_fallthru
      _
    // Predicated region
    $region6: #{tpu_custom_call.1} parent=1 // pred_check
      _
    $region7: #{tpu_custom_call.1} parent=1 // pred_check_branch
      %14 = sbr.rel (0) target = $region9
    $region8: #{tpu_custom_call.1} parent=1 // pred_region
      _
    $region9: #{tpu_custom_call.1} parent=1 // pred_fallthru
      _
    // Predicated region
    $region10: #{tpu_custom_call.1} parent=1 // pred_check
      _
    $region11: #{tpu_custom_call.1} parent=1 // pred_check_branch
      %16 = sbr.rel (0) target = $region13
    $region12: #{tpu_custom_call.1} parent=1 // pred_region
      _
    $region13: #{tpu_custom_call.1} parent=1 // pred_fallthru
      _
    // Predicated region
    $region14: #{tpu_custom_call.1} parent=1 // pred_check
      _
    $region15: #{tpu_custom_call.1} parent=1 // pred_check_branch
      %18 = sbr.rel (0) target = $region17
    $region16: #{tpu_custom_call.1} parent=1 // pred_region
      _
    $region17: #{tpu_custom_call.1} parent=1 // pred_fallthru
      _
    // Predicated region
    $region18: #{tpu_custom_call.1} parent=1 // pred_check
      _
    $region19: #{tpu_custom_call.1} parent=1 // pred_check_branch
      %20 = sbr.rel (0) target = $region21
    $region20: #{tpu_custom_call.1} parent=1 // pred_region
      _
    $region21: #{tpu_custom_call.1} parent=1 // pred_fallthru
      _
    %v22 = vld [vmem:[%s0] sm:$0xff]
    %v23 = vpack.c.bf16 %v22, %v22
    %v24 = vld [vmem:[%s1] sm:$0xff]
    %v25 = vld [vmem:[%s1 + $0x8] sm:$0xff]
    %v26 = vld [vmem:[%s1 + $0x10] sm:$0xff]
    %v27 = vld [vmem:[%s1 + $0x18] sm:$0xff]
    %v28 = vld [vmem:[%s2] sm:$0x3]
    %v30 = vperm.slane %v28, 0
    %v31 = vperm.slane %v28, 1
    %v38 = vunpack.c.l.b16 %v24
    %v39 = vunpack.c.h.b16 %v24
    %v40 = vunpack.c.l.b16 %v25
    %v41 = vunpack.c.h.b16 %v25
    %v42 = vunpack.c.l.b16 %v26
    %v43 = vunpack.c.h.b16 %v26
    %v44 = vunpack.c.l.b16 %v27
    %v45 = vunpack.c.h.b16 %v27
    %v46 = vpack.c.b16 %v40, %v38
    %v47 = vpack.c.b16 %v41, %v39
    %v48 = vpack.c.b16 %v44, %v42
    %v49 = vpack.c.b16 %v45, %v43
    %vm54 = vcmask 261120
    %v56 = vsel %vm54, %v23, 0
    %58 = vmatpush.bf16.msra.mxu0 0
    %59 = vmatpush.bf16.msra.mxu0 0
    %60 = vmatpush.bf16.msra.mxu0 0
    %61 = vmatpush.bf16.msra.mxu0 0
    %62 = vmatpush.bf16.msra.mxu0 0
    %63 = vmatpush.bf16.msra.mxu0 0
    %64 = vmatpush.bf16.msra.mxu0 %v48
    %65 = vmatpush.bf16.msra.mxu0 %v46
    %66 = vmatmul.bf16.gmra.mxu0 %v56
    %v67 = vpop.f32.mrf.mxu0
    %v68 = vadd.f32 %v30, %v67
    %v69 = vpop.f32.mrf.mxu0
    %70 = vdwg.mxu0
    %71 = vmatpush.bf16.msra.mxu0 0
    %72 = vmatpush.bf16.msra.mxu0 0
    %73 = vmatpush.bf16.msra.mxu0 0
    %74 = vmatpush.bf16.msra.mxu0 0
    %75 = vmatpush.bf16.msra.mxu0 0
    %76 = vmatpush.bf16.msra.mxu0 0
    %77 = vmatpush.bf16.msra.mxu0 %v49
    %78 = vmatpush.bf16.msra.mxu0 %v47
    %79 = vmatmul.bf16.gmra.mxu0 %v56
    %v80 = vpop.f32.mrf.mxu0
    %v81 = vadd.f32 %v31, %v80
    %v82 = vpop.f32.mrf.mxu0
    %83 = vdwg.mxu0
    %v84 = vmax.f32 %v68, 0.0
    %v85 = vmax.f32 %v81, 0.0
    %v86 = vpack.c.bf16 %v84, %v84
    %v87 = vpack.c.bf16 %v85, %v85
    %v88 = vld [vmem:[%s3] sm:$0xf]
    %v89 = vld [vmem:[%s3 + $0x4] sm:$0xf]
    %v90 = vld [vmem:[%s3 + $0x8] sm:$0xf]
    %v91 = vld [vmem:[%s3 + $0xc] sm:$0xf]
    %v92 = vld [vmem:[%s3 + $0x10] sm:$0xf]
    %v93 = vld [vmem:[%s3 + $0x14] sm:$0xf]
    %v94 = vld [vmem:[%s3 + $0x18] sm:$0xf]
    %v95 = vld [vmem:[%s3 + $0x1c] sm:$0xf]
    %v96 = vld [vmem:[%s3 + $0x20] sm:$0xf]
    %v97 = vld [vmem:[%s3 + $0x24] sm:$0xf]
    %v98 = vld [vmem:[%s3 + $0x28] sm:$0xf]
    %v99 = vld [vmem:[%s3 + $0x2c] sm:$0xf]
    %v100 = vld [vmem:[%s3 + $0x30] sm:$0xf]
    %v101 = vld [vmem:[%s3 + $0x34] sm:$0xf]
    %v102 = vld [vmem:[%s3 + $0x38] sm:$0xf]
    %v103 = vld [vmem:[%s3 + $0x3c] sm:$0xf]
    %v104 = vld [vmem:[%s3 + $0x40] sm:$0xf]
    %v105 = vld [vmem:[%s3 + $0x44] sm:$0xf]
    %v106 = vld [vmem:[%s3 + $0x48] sm:$0xf]
    %v107 = vld [vmem:[%s3 + $0x4c] sm:$0xf]
    %v108 = vld [vmem:[%s3 + $0x50] sm:$0xf]
    %v109 = vld [vmem:[%s3 + $0x54] sm:$0xf]
    %v110 = vld [vmem:[%s3 + $0x58] sm:$0xf]
    %v111 = vld [vmem:[%s3 + $0x5c] sm:$0xf]
    %v112 = vld [vmem:[%s3 + $0x60] sm:$0xf]
    %v113 = vld [vmem:[%s3 + $0x64] sm:$0xf]
    %v114 = vld [vmem:[%s3 + $0x68] sm:$0xf]
    %v115 = vld [vmem:[%s3 + $0x6c] sm:$0xf]
    %v116 = vld [vmem:[%s3 + $0x70] sm:$0xf]
    %v117 = vld [vmem:[%s3 + $0x74] sm:$0xf]
    %v118 = vld [vmem:[%s3 + $0x78] sm:$0xf]
    %v119 = vld [vmem:[%s3 + $0x7c] sm:$0xf]
    %v120 = vld [vmem:[%s4] sm:$0x1]
    %v122 = vperm.slane %v120, 0
    %v156 = vunpack.c.l.b16 %v88
    %v157 = vunpack.c.l.b16 %v89
    %v158 = vunpack.c.l.b16 %v90
    %v159 = vunpack.c.l.b16 %v91
    %v160 = vunpack.c.l.b16 %v92
    %v161 = vunpack.c.l.b16 %v93
    %v162 = vunpack.c.l.b16 %v94
    %v163 = vunpack.c.l.b16 %v95
    %v164 = vunpack.c.l.b16 %v96
    %v165 = vunpack.c.l.b16 %v97
    %v166 = vunpack.c.l.b16 %v98
    %v167 = vunpack.c.l.b16 %v99
    %v168 = vunpack.c.l.b16 %v100
    %v169 = vunpack.c.l.b16 %v101
    %v170 = vunpack.c.l.b16 %v102
    %v171 = vunpack.c.l.b16 %v103
    %v172 = vunpack.c.l.b16 %v104
    %v173 = vunpack.c.l.b16 %v105
    %v174 = vunpack.c.l.b16 %v106
    %v175 = vunpack.c.l.b16 %v107
    %v176 = vunpack.c.l.b16 %v108
    %v177 = vunpack.c.l.b16 %v109
    %v178 = vunpack.c.l.b16 %v110
    %v179 = vunpack.c.l.b16 %v111
    %v180 = vunpack.c.l.b16 %v112
    %v181 = vunpack.c.l.b16 %v113
    %v182 = vunpack.c.l.b16 %v114
    %v183 = vunpack.c.l.b16 %v115
    %v184 = vunpack.c.l.b16 %v116
    %v185 = vunpack.c.l.b16 %v117
    %v186 = vunpack.c.l.b16 %v118
    %v187 = vunpack.c.l.b16 %v119
    %v188 = vpack.c.b16 %v157, %v156
    %v189 = vpack.c.b16 %v159, %v158
    %v190 = vpack.c.b16 %v161, %v160
    %v191 = vpack.c.b16 %v163, %v162
    %v192 = vpack.c.b16 %v165, %v164
    %v193 = vpack.c.b16 %v167, %v166
    %v194 = vpack.c.b16 %v169, %v168
    %v195 = vpack.c.b16 %v171, %v170
    %v196 = vpack.c.b16 %v173, %v172
    %v197 = vpack.c.b16 %v175, %v174
    %v198 = vpack.c.b16 %v177, %v176
    %v199 = vpack.c.b16 %v179, %v178
    %v200 = vpack.c.b16 %v181, %v180
    %v201 = vpack.c.b16 %v183, %v182
    %v202 = vpack.c.b16 %v185, %v184
    %v203 = vpack.c.b16 %v187, %v186
    %220 = vmatpush.bf16.msra.mxu0 %v195
    %221 = vmatpush.bf16.msra.mxu0 %v194
    %222 = vmatpush.bf16.msra.mxu0 %v193
    %223 = vmatpush.bf16.msra.mxu0 %v192
    %224 = vmatpush.bf16.msra.mxu0 %v191
    %225 = vmatpush.bf16.msra.mxu0 %v190
    %226 = vmatpush.bf16.msra.mxu0 %v189
    %227 = vmatpush.bf16.msra.mxu0 %v188
    %228 = vmatmul.bf16.gmra.mxu0 %v86
    %v229 = vpop.f32.mrf.mxu0
    %v230 = vadd.f32 %v122, %v229
    %v231 = vpop.f32.mrf.mxu0
    %232 = vdwg.mxu0
    %233 = vmatpush.bf16.msra.mxu0 %v203
    %234 = vmatpush.bf16.msra.mxu0 %v202
    %235 = vmatpush.bf16.msra.mxu0 %v201
    %236 = vmatpush.bf16.msra.mxu0 %v200
    %237 = vmatpush.bf16.msra.mxu0 %v199
    %238 = vmatpush.bf16.msra.mxu0 %v198
    %239 = vmatpush.bf16.msra.mxu0 %v197
    %240 = vmatpush.bf16.msra.mxu0 %v196
    %241 = vmatmul.bf16.gmra.mxu0 %v87
    %v242 = vpop.f32.mrf.mxu0
    %v243 = vadd.f32 %v230, %v242
    %v244 = vpop.f32.mrf.mxu0
    %245 = vdwg.mxu0
    %246 = vst.msk [vmem:[#allocation2] sm:$0xff] %vm54, %v243
    // Predicated region
    $region22: #{tpu_custom_call.1} parent=1 // pred_check
      _
    $region23: #{tpu_custom_call.1} parent=1 // pred_check_branch
      %248 = sbr.rel (0) target = $region25
    $region24: #{tpu_custom_call.1} parent=1 // pred_region
      %250 = vsyncadd [#allocation3], 0
      %s252 = sshll.u32 [#allocation2], 4
      %s253 = int_to_ptr.vmem [resolvable:$true] %s252
      %s254 = sshll.u32 %s5, 4
      %s255 = int_to_ptr.hbm [resolvable:$true] %s254
      %257 = dma.vmem_to_hbm [thread:$0]  %s253, 128, %s255, [#allocation3]
    $region25: #{tpu_custom_call.1} parent=1 // pred_fallthru
      _
    // Predicated region
    $region26: #{tpu_custom_call.1} parent=1 // pred_check
      _
    $region27: #{tpu_custom_call.1} parent=1 // pred_check_branch
      %259 = sbr.rel (0) target = $region29
    $region28: #{tpu_custom_call.1} parent=1 // pred_region
      %261 = dma.done [#allocation3], 128
    $region29: #{tpu_custom_call.1} parent=1 // pred_fallthru
      _
    %262 = vsyncpa [#allocation3], 1

// kernel: tpu_custom_call.1
$region0: #{tpu_custom_call.1}
  #allocation0 [shape = 'u32[]', space=smem, size = 0x4, offset = 0x4, fixed_abs, tag = 'smem constant byte address 0x4 - core index']
  #allocation1 [shape = 'u32[72,128]{1,0:T(1,128)}', space=vmem, size = 0x9000, scoped, tag = 'internal scratch']
  %s0 = inlined_call_operand.vmem [shape: f32[8,32], index: 0, kind: input, shape index: {}]
  %s1 = inlined_call_operand.vmem [shape: bf16[32,256], index: 1, kind: input, shape index: {}]
  %s2 = inlined_call_operand.vmem [shape: f32[1,256], index: 2, kind: input, shape index: {}]
  %s3 = inlined_call_operand.vmem [shape: bf16[256,32], index: 3, kind: input, shape index: {}]
  %s4 = inlined_call_operand.vmem [shape: f32[1,32], index: 4, kind: input, shape index: {}]
  %s5 = inlined_call_operand.hbm [shape: f32[8,32], index: 5, kind: output, shape index: {}]
  %s6 = sld [smem:[#allocation0]]
  $region30: #{tpu_custom_call.1} parent=0
    _
  %s8 = ssub.s32 1, %s6
  %s9 = scalar_select 0, %s8, %s6
  $region1: #{tpu_custom_call.1} parent=0
    #allocation2 [shape = 'u8[4096]{0}', space=vmem, size = 0x1000, scoped, tag = 'output window, operand 0, single buffered']
    #allocation3 [shape = 's32[1]{0}', space=sflag, size = 0x4, scoped, tag = 'scoped memory for tpu_custom_call.1']
    %10 = vsyncpa [#allocation3], 0
    // Predicated region
    $region2: #{tpu_custom_call.1} parent=1 // pred_check
      _
    $region3: #{tpu_custom_call.1} parent=1 // pred_check_branch
      %12 = sbr.rel (0) target = $region5
    $region4: #{tpu_custom_call.1} parent=1 // pred_region
      _
    $region5: #{tpu_custom_call.1} parent=1 // pred_fallthru
      _
    // Predicated region
    $region6: #{tpu_custom_call.1} parent=1 // pred_check
      _
    $region7: #{tpu_custom_call.1} parent=1 // pred_check_branch
      %14 = sbr.rel (0) target = $region9
    $region8: #{tpu_custom_call.1} parent=1 // pred_region
      _
    $region9: #{tpu_custom_call.1} parent=1 // pred_fallthru
      _
    // Predicated region
    $region10: #{tpu_custom_call.1} parent=1 // pred_check
      _
    $region11: #{tpu_custom_call.1} parent=1 // pred_check_branch
      %16 = sbr.rel (0) target = $region13
    $region12: #{tpu_custom_call.1} parent=1 // pred_region
      _
    $region13: #{tpu_custom_call.1} parent=1 // pred_fallthru
      _
    // Predicated region
    $region14: #{tpu_custom_call.1} parent=1 // pred_check
      _
    $region15: #{tpu_custom_call.1} parent=1 // pred_check_branch
      %18 = sbr.rel (0) target = $region17
    $region16: #{tpu_custom_call.1} parent=1 // pred_region
      _
    $region17: #{tpu_custom_call.1} parent=1 // pred_fallthru
      _
    // Predicated region
    $region18: #{tpu_custom_call.1} parent=1 // pred_check
      _
    $region19: #{tpu_custom_call.1} parent=1 // pred_check_branch
      %20 = sbr.rel (0) target = $region21
    $region20: #{tpu_custom_call.1} parent=1 // pred_region
      _
    $region21: #{tpu_custom_call.1} parent=1 // pred_fallthru
      _
    %v22 = vld [vmem:[%s0] sm:$0xff]
    %v23 = vpack.c.bf16 %v22, %v22
    %v24 = vld [vmem:[%s1] sm:$0xff]
    %v25 = vld [vmem:[%s1 + $0x8] sm:$0xff]
    %v26 = vld [vmem:[%s1 + $0x10] sm:$0xff]
    %v27 = vld [vmem:[%s1 + $0x18] sm:$0xff]
    %v28 = vld [vmem:[%s2] sm:$0x3]
    %v30 = vperm.slane %v28, 0
    %v31 = vperm.slane %v28, 1
    %v38 = vunpack.c.l.b16 %v24
    %v39 = vunpack.c.h.b16 %v24
    %v40 = vunpack.c.l.b16 %v25
    %v41 = vunpack.c.h.b16 %v25
    %v42 = vunpack.c.l.b16 %v26
    %v43 = vunpack.c.h.b16 %v26
    %v44 = vunpack.c.l.b16 %v27
    %v45 = vunpack.c.h.b16 %v27
    %v46 = vpack.c.b16 %v40, %v38
    %v47 = vpack.c.b16 %v41, %v39
    %v48 = vpack.c.b16 %v44, %v42
    %v49 = vpack.c.b16 %v45, %v43
    %vm54 = vcmask 261120
    %v56 = vsel %vm54, %v23, 0
    %58 = vmatpush.bf16.msra.mxu0 0
    %59 = vmatpush.bf16.msra.mxu0 0
    %60 = vmatpush.bf16.msra.mxu0 0
    %61 = vmatpush.bf16.msra.mxu0 0
    %62 = vmatpush.bf16.msra.mxu0 0
    %63 = vmatpush.bf16.msra.mxu0 0
    %64 = vmatpush.bf16.msra.mxu0 %v48
    %65 = vmatpush.bf16.msra.mxu0 %v46
    %66 = vmatmul.bf16.gmra.mxu0 %v56
    %v67 = vpop.f32.mrf.mxu0
    %v68 = vadd.f32 %v30, %v67
    %v69 = vpop.f32.mrf.mxu0
    %70 = vdwg.mxu0
    %71 = vmatpush.bf16.msra.mxu0 0
    %72 = vmatpush.bf16.msra.mxu0 0
    %73 = vmatpush.bf16.msra.mxu0 0
    %74 = vmatpush.bf16.msra.mxu0 0
    %75 = vmatpush.bf16.msra.mxu0 0
    %76 = vmatpush.bf16.msra.mxu0 0
    %77 = vmatpush.bf16.msra.mxu0 %v49
    %78 = vmatpush.bf16.msra.mxu0 %v47
    %79 = vmatmul.bf16.gmra.mxu0 %v56
    %v80 = vpop.f32.mrf.mxu0
    %v81 = vadd.f32 %v31, %v80
    %v82 = vpop.f32.mrf.mxu0
    %83 = vdwg.mxu0
    %v84 = vmax.f32 %v68, 0.0
    %v85 = vmax.f32 %v81, 0.0
    %v86 = vpack.c.bf16 %v84, %v84
    %v87 = vpack.c.bf16 %v85, %v85
    %v88 = vld [vmem:[%s3] sm:$0xf]
    %v89 = vld [vmem:[%s3 + $0x4] sm:$0xf]
    %v90 = vld [vmem:[%s3 + $0x8] sm:$0xf]
    %v91 = vld [vmem:[%s3 + $0xc] sm:$0xf]
    %v92 = vld [vmem:[%s3 + $0x10] sm:$0xf]
    %v93 = vld [vmem:[%s3 + $0x14] sm:$0xf]
    %v94 = vld [vmem:[%s3 + $0x18] sm:$0xf]
    %v95 = vld [vmem:[%s3 + $0x1c] sm:$0xf]
    %v96 = vld [vmem:[%s3 + $0x20] sm:$0xf]
    %v97 = vld [vmem:[%s3 + $0x24] sm:$0xf]
    %v98 = vld [vmem:[%s3 + $0x28] sm:$0xf]
    %v99 = vld [vmem:[%s3 + $0x2c] sm:$0xf]
    %v100 = vld [vmem:[%s3 + $0x30] sm:$0xf]
    %v101 = vld [vmem:[%s3 + $0x34] sm:$0xf]
    %v102 = vld [vmem:[%s3 + $0x38] sm:$0xf]
    %v103 = vld [vmem:[%s3 + $0x3c] sm:$0xf]
    %v104 = vld [vmem:[%s3 + $0x40] sm:$0xf]
    %v105 = vld [vmem:[%s3 + $0x44] sm:$0xf]
    %v106 = vld [vmem:[%s3 + $0x48] sm:$0xf]
    %v107 = vld [vmem:[%s3 + $0x4c] sm:$0xf]
    %v108 = vld [vmem:[%s3 + $0x50] sm:$0xf]
    %v109 = vld [vmem:[%s3 + $0x54] sm:$0xf]
    %v110 = vld [vmem:[%s3 + $0x58] sm:$0xf]
    %v111 = vld [vmem:[%s3 + $0x5c] sm:$0xf]
    %v112 = vld [vmem:[%s3 + $0x60] sm:$0xf]
    %v113 = vld [vmem:[%s3 + $0x64] sm:$0xf]
    %v114 = vld [vmem:[%s3 + $0x68] sm:$0xf]
    %v115 = vld [vmem:[%s3 + $0x6c] sm:$0xf]
    %v116 = vld [vmem:[%s3 + $0x70] sm:$0xf]
    %v117 = vld [vmem:[%s3 + $0x74] sm:$0xf]
    %v118 = vld [vmem:[%s3 + $0x78] sm:$0xf]
    %v119 = vld [vmem:[%s3 + $0x7c] sm:$0xf]
    %v120 = vld [vmem:[%s4] sm:$0x1]
    %v122 = vperm.slane %v120, 0
    %v156 = vunpack.c.l.b16 %v88
    %v157 = vunpack.c.l.b16 %v89
    %v158 = vunpack.c.l.b16 %v90
    %v159 = vunpack.c.l.b16 %v91
    %v160 = vunpack.c.l.b16 %v92
    %v161 = vunpack.c.l.b16 %v93
    %v162 = vunpack.c.l.b16 %v94
    %v163 = vunpack.c.l.b16 %v95
    %v164 = vunpack.c.l.b16 %v96
    %v165 = vunpack.c.l.b16 %v97
    %v166 = vunpack.c.l.b16 %v98
    %v167 = vunpack.c.l.b16 %v99
    %v168 = vunpack.c.l.b16 %v100
    %v169 = vunpack.c.l.b16 %v101
    %v170 = vunpack.c.l.b16 %v102
    %v171 = vunpack.c.l.b16 %v103
    %v172 = vunpack.c.l.b16 %v104
    %v173 = vunpack.c.l.b16 %v105
    %v174 = vunpack.c.l.b16 %v106
    %v175 = vunpack.c.l.b16 %v107
    %v176 = vunpack.c.l.b16 %v108
    %v177 = vunpack.c.l.b16 %v109
    %v178 = vunpack.c.l.b16 %v110
    %v179 = vunpack.c.l.b16 %v111
    %v180 = vunpack.c.l.b16 %v112
    %v181 = vunpack.c.l.b16 %v113
    %v182 = vunpack.c.l.b16 %v114
    %v183 = vunpack.c.l.b16 %v115
    %v184 = vunpack.c.l.b16 %v116
    %v185 = vunpack.c.l.b16 %v117
    %v186 = vunpack.c.l.b16 %v118
    %v187 = vunpack.c.l.b16 %v119
    %v188 = vpack.c.b16 %v157, %v156
    %v189 = vpack.c.b16 %v159, %v158
    %v190 = vpack.c.b16 %v161, %v160
    %v191 = vpack.c.b16 %v163, %v162
    %v192 = vpack.c.b16 %v165, %v164
    %v193 = vpack.c.b16 %v167, %v166
    %v194 = vpack.c.b16 %v169, %v168
    %v195 = vpack.c.b16 %v171, %v170
    %v196 = vpack.c.b16 %v173, %v172
    %v197 = vpack.c.b16 %v175, %v174
    %v198 = vpack.c.b16 %v177, %v176
    %v199 = vpack.c.b16 %v179, %v178
    %v200 = vpack.c.b16 %v181, %v180
    %v201 = vpack.c.b16 %v183, %v182
    %v202 = vpack.c.b16 %v185, %v184
    %v203 = vpack.c.b16 %v187, %v186
    %220 = vmatpush.bf16.msra.mxu0 %v195
    %221 = vmatpush.bf16.msra.mxu0 %v194
    %222 = vmatpush.bf16.msra.mxu0 %v193
    %223 = vmatpush.bf16.msra.mxu0 %v192
    %224 = vmatpush.bf16.msra.mxu0 %v191
    %225 = vmatpush.bf16.msra.mxu0 %v190
    %226 = vmatpush.bf16.msra.mxu0 %v189
    %227 = vmatpush.bf16.msra.mxu0 %v188
    %228 = vmatmul.bf16.gmra.mxu0 %v86
    %v229 = vpop.f32.mrf.mxu0
    %v230 = vadd.f32 %v122, %v229
    %v231 = vpop.f32.mrf.mxu0
    %232 = vdwg.mxu0
    %233 = vmatpush.bf16.msra.mxu0 %v203
    %234 = vmatpush.bf16.msra.mxu0 %v202
    %235 = vmatpush.bf16.msra.mxu0 %v201
    %236 = vmatpush.bf16.msra.mxu0 %v200
    %237 = vmatpush.bf16.msra.mxu0 %v199
    %238 = vmatpush.bf16.msra.mxu0 %v198
    %239 = vmatpush.bf16.msra.mxu0 %v197
    %240 = vmatpush.bf16.msra.mxu0 %v196
    %241 = vmatmul.bf16.gmra.mxu0 %v87
    %v242 = vpop.f32.mrf.mxu0
    %v243 = vadd.f32 %v230, %v242
    %v244 = vpop.f32.mrf.mxu0
    %245 = vdwg.mxu0
    %246 = vst.msk [vmem:[#allocation2] sm:$0xff] %vm54, %v243
    // Predicated region
    $region22: #{tpu_custom_call.1} parent=1 // pred_check
      _
    $region23: #{tpu_custom_call.1} parent=1 // pred_check_branch
      %248 = sbr.rel (0) target = $region25
    $region24: #{tpu_custom_call.1} parent=1 // pred_region
      %250 = vsyncadd [#allocation3], 0
      %s252 = sshll.u32 [#allocation2], 4
      %s253 = int_to_ptr.vmem [resolvable:$true] %s252
      %s254 = sshll.u32 %s5, 4
      %s255 = int_to_ptr.hbm [resolvable:$true] %s254
      %257 = dma.vmem_to_hbm [thread:$0]  %s253, 128, %s255, [#allocation3]
    $region25: #{tpu_custom_call.1} parent=1 // pred_fallthru
      _
    // Predicated region
    $region26: #{tpu_custom_call.1} parent=1 // pred_check
      _
    $region27: #{tpu_custom_call.1} parent=1 // pred_check_branch
      %259 = sbr.rel (0) target = $region29
    $region28: #{tpu_custom_call.1} parent=1 // pred_region
      %261 = dma.done [#allocation3], 128
    $region29: #{tpu_custom_call.1} parent=1 // pred_fallthru
      _
    %262 = vsyncpa [#allocation3], 1

</llo_original>
